<compile_context>
chip_gen: v6e
topology: v6e:2x2x1
jax: 0.10.0
libtpu: 0.0.40
codegen_flags: <defaults>
</compile_context>

<pallas_src>
import functools

import jax
import jax.numpy as jnp
from jax import lax
from jax.experimental import pallas as pl
from jax.experimental.pallas import tpu as pltpu


def _dconv_kernel(
    x_ref,       # (C, L)      bf16  packed input (L = Bt*T), head-minor channel order
    band_ref,    # (k, L)      f32   additive band mask: 0 in-band, -1e30 out-of-band
    sel_ref,     # (Bt, L)     f32   0/1 selector rows, one per packed batch element
    w_lin_ref,   # (2C, C)     bf16  GLU linear (rows permuted to head-minor order)
    b_lin_ref,   # (2C, 1)     f32
    w_w_ref,     # (H*k, C)    bf16  dynamic-weight linear, rows tap-major (d*H + h)
    b_w_ref,     # (H*k, 1)    f32
    dbias_ref,   # (C, 1)      f32   module's `self.bias` (permuted)
    w_pw_ref,    # (C_out, C)  bf16  pointwise 1x1 conv (cols permuted)
    b_pw_ref,    # (C_out, 1)  f32
    gamma_ref,   # (C_out, 1)  f32   GroupNorm affine scale
    beta_ref,    # (C_out, 1)  f32   GroupNorm affine shift
    o_ref,       # (C_out, L)  f32
    *,
    wshare: int,
    kernel_size: int,
    seq_len: int,
    batch_tile: int,
):
    H, k, T, Bt = wshare, kernel_size, seq_len, batch_tile
    pad = (k - 1) // 2

    x = x_ref[...]                                   # (C, L) bf16
    C, L = x.shape
    Ch = C // H

    # ---- Linear(C -> 2C) + GLU (channel-major: W @ x, bf16 MXU, f32 accum) ----
    lin = jnp.dot(w_lin_ref[...], x,
                  preferred_element_type=jnp.float32) + b_lin_ref[...]     # (2C, L)
    g = lin[:C, :] * jax.nn.sigmoid(lin[C:, :])                            # (C, L) f32

    # ---- dynamic tap logits: Linear(C -> H*k), tap-major rows ----
    logits = jnp.dot(w_w_ref[...], g.astype(jnp.bfloat16),
                     preferred_element_type=jnp.float32) + b_w_ref[...]    # (H*k, L)

    # ---- fused banded softmax + banded attention over the k taps ----
    # Pass 1: running max (center tap is always in-band, so m stays finite).
    m = logits[pad * H:(pad + 1) * H, :]                                   # (H, L)
    for d in range(k):
        if d == pad:
            continue
        m = jnp.maximum(m, logits[d * H:(d + 1) * H, :] + band_ref[d:d + 1, :])

    # Pass 2: exp, denominator, and unnormalized output in one sweep.
    #   y[c, t] = sum_d p[c % H, t, d] * g[c, t + d - pad]   (head-minor order)
    # Out-of-band taps get exp(-1e30 - m) == 0 exactly, so the lane-shifted
    # copies of g never leak across packed batch elements or sequence edges.
    s = jnp.zeros((H, L), dtype=jnp.float32)
    y_un = jnp.zeros((C, L), dtype=jnp.float32)
    for d in range(k):
        e = jnp.exp(logits[d * H:(d + 1) * H, :] + band_ref[d:d + 1, :] - m)  # (H, L)
        s = s + e
        shift = pad - d
        g_sh = g if shift == 0 else jnp.roll(g, shift, axis=1)
        # head -> channel expansion is a pure sublane tile (channels are
        # head-minor), no matmul, no reshape: row j of the result is e[j % H].
        y_un = y_un + jnp.concatenate([e] * Ch, axis=0) * g_sh

    inv_s = pl.reciprocal(s, approx=False)                                 # (H, L)
    y = y_un * jnp.concatenate([inv_s] * Ch, axis=0) + dbias_ref[...]      # (C, L)

    # ---- pointwise 1x1 conv (channel matmul) ----
    z = jnp.dot(w_pw_ref[...], y.astype(jnp.bfloat16),
                preferred_element_type=jnp.float32) + b_pw_ref[...]        # (C_out, L)

    # ---- GroupNorm(1, C_out): per packed batch element, one-pass stats ----
    C_out = z.shape[0]
    s_row = jnp.sum(z, axis=0, keepdims=True)                              # (1, L)
    s2_row = jnp.sum(z * z, axis=0, keepdims=True)                         # (1, L)
    inv_n = 1.0 / float(C_out * T)
    mean_col = jnp.zeros((1, L), dtype=jnp.float32)
    rstd_col = jnp.zeros((1, L), dtype=jnp.float32)
    for b in range(Bt):
        sel = sel_ref[b:b + 1, :]                                          # (1, L)
        mu = jnp.sum(sel * s_row, keepdims=True) * inv_n                   # (1, 1)
        ex2 = jnp.sum(sel * s2_row, keepdims=True) * inv_n                 # (1, 1)
        var = jnp.maximum(ex2 - mu * mu, 0.0)
        rstd = lax.rsqrt(var + 1e-5)
        mean_col = mean_col + sel * mu
        rstd_col = rstd_col + sel * rstd

    o_ref[...] = ((z - mean_col) * rstd_col * gamma_ref[...]
                  + beta_ref[...]).astype(o_ref.dtype)


def _pick_batch_tile(B, T):
    """Pick Bt | B whose lane width Bt*T is (8,128)-legal and >= 256 if possible."""
    candidates = [bt for bt in range(1, B + 1)
                  if B % bt == 0 and ((bt * T) % 128 == 0 or bt == B)]
    for bt in candidates:
        if bt * T >= 256:
            return bt
    return candidates[-1]


def _vmem_limit_bytes(C, C_out, H, k, L):
    """Generous working-set estimate, capped at v7x's 64 MiB physical VMEM."""
    f32, bf16 = 4, 2
    weights = ((2 * C * C + H * k * C + C_out * C) * bf16
               + (3 * C + H * k + 3 * C_out) * f32)
    io = 2 * C * L * bf16 + 2 * C_out * L * f32          # double-buffered blocks
    acts = L * ((2 * C) * f32 + C * f32 + C * bf16 + (H * k) * f32
                + 6 * H * f32 + 4 * C * f32 + 2 * C_out * f32 + (k + 8) * f32)
    est = 2 * weights + io + 2 * acts + (4 << 20)
    return int(min(max(est, 32 << 20), 64 << 20))


def contextnet_dconv(x_bct, input_lengths, params, *, wshare, kernel_size,
                     stride=1, padding=0):
    """x_bct: (B, C, T) float32, input_lengths: (B,) int32.

    params use the PyTorch module's native parameter shapes:
      w_lin (2C, C), b_lin (2C,), w_w (H*k, C), b_w (H*k,), dbias (C,),
      w_pw (C_out, C), b_pw (C_out,), gamma (C_out,), beta (C_out,).
    """
    B, C, T = x_bct.shape
    H, k = wshare, kernel_size
    assert C % H == 0
    Ch = C // H
    C_out = params["w_pw"].shape[0]
    pad = (k - 1) // 2

    Bt = _pick_batch_tile(B, T)
    L = Bt * T

    # Head-minor channel permutation: new channel j <- original channel
    # c(j) = (j % H) * Ch + (j // H), so head(new j) == j % H and the in-kernel
    # head->channel expansion is a plain sublane tile.  Exact reordering only.
    jidx = jnp.arange(C, dtype=jnp.int32)
    chan_perm = (jidx % H) * Ch + (jidx // H)
    # Tap-major row order for the dynamic-weight linear: new row d*H + h holds
    # original row h*k + d, so tap d is a contiguous (H, C) slice in-kernel.
    tap_perm = jnp.array([h * k + d for d in range(k) for h in range(H)],
                         dtype=jnp.int32)

    w_lin = jnp.concatenate([params["w_lin"][:C][chan_perm],
                             params["w_lin"][C:][chan_perm]],
                            axis=0).astype(jnp.bfloat16)                   # (2C, C)
    b_lin = jnp.concatenate([params["b_lin"][:C][chan_perm],
                             params["b_lin"][C:][chan_perm]],
                            axis=0).reshape(2 * C, 1)
    w_w = params["w_w"][tap_perm][:, chan_perm].astype(jnp.bfloat16)       # (H*k, C)
    b_w = params["b_w"][tap_perm].reshape(H * k, 1)
    dbias = params["dbias"][chan_perm].reshape(C, 1)
    w_pw = params["w_pw"][:, chan_perm].astype(jnp.bfloat16)               # (C_out, C)
    b_pw = params["b_pw"].reshape(C_out, 1)
    gamma = params["gamma"].reshape(C_out, 1)
    beta = params["beta"].reshape(C_out, 1)

    # Per-column constants for one packed (Bt*T)-wide block (avoid in-kernel
    # vector integer div/mod): additive band mask keyed to t mod T, and 0/1
    # per-element selector rows for GroupNorm statistics.
    cols = jnp.arange(L, dtype=jnp.int32)
    tmod = cols % T
    src = tmod[None, :] + (jnp.arange(k, dtype=jnp.int32)[:, None] - pad)  # (k, L)
    band_mask = jnp.where((src >= 0) & (src < T), 0.0, -1e30).astype(jnp.float32)
    gn_sel = (cols[None, :] // T
              == jnp.arange(Bt, dtype=jnp.int32)[:, None]).astype(jnp.float32)

    # Channel-major packed activations, streamed in bf16 (MXU operand dtype).
    x_cl = jnp.transpose(x_bct.astype(jnp.bfloat16), (1, 0, 2)).reshape(C, B * T)

    kern = functools.partial(_dconv_kernel, wshare=H, kernel_size=k,
                             seq_len=T, batch_tile=Bt)

    out_cl = pl.pallas_call(
        kern,
        out_shape=jax.ShapeDtypeStruct((C_out, B * T), jnp.float32),
        grid=(B // Bt,),
        in_specs=[
            pl.BlockSpec((C, L), lambda i: (0, i)),
            # Constant-index-map blocks stay resident across grid steps.
            pl.BlockSpec((k, L), lambda i: (0, 0)),
            pl.BlockSpec((Bt, L), lambda i: (0, 0)),
            pl.BlockSpec((2 * C, C), lambda i: (0, 0)),
            pl.BlockSpec((2 * C, 1), lambda i: (0, 0)),
            pl.BlockSpec((H * k, C), lambda i: (0, 0)),
            pl.BlockSpec((H * k, 1), lambda i: (0, 0)),
            pl.BlockSpec((C, 1), lambda i: (0, 0)),
            pl.BlockSpec((C_out, C), lambda i: (0, 0)),
            pl.BlockSpec((C_out, 1), lambda i: (0, 0)),
            pl.BlockSpec((C_out, 1), lambda i: (0, 0)),
            pl.BlockSpec((C_out, 1), lambda i: (0, 0)),
        ],
        out_specs=pl.BlockSpec((C_out, L), lambda i: (0, i)),
        compiler_params=pltpu.CompilerParams(
            dimension_semantics=("parallel",),
            vmem_limit_bytes=_vmem_limit_bytes(C, C_out, H, k, L),
        ),
    )(x_cl, band_mask, gn_sel, w_lin, b_lin, w_w, b_w, dbias, w_pw, b_pw,
      gamma, beta)

    out = out_cl.reshape(C_out, B, T).transpose(1, 0, 2)                   # (B, C_out, T)

    if stride == 1:
        pad_size = (kernel_size - 1) // 2
    else:
        pad_size = padding
    out_lengths = (input_lengths + 2 * pad_size - kernel_size) // stride + 1
    return out, out_lengths


def init_params(key, C, C_out, H, ksz):
    """Deterministic synthetic parameters in PyTorch-native shapes."""
    ks = jax.random.split(key, 9)
    s = 1.0 / (C ** 0.5)
    return {
        "w_lin": s * jax.random.normal(ks[0], (2 * C, C), jnp.float32),
        "b_lin": 0.1 * jax.random.normal(ks[1], (2 * C,), jnp.float32),
        "w_w":   s * jax.random.normal(ks[2], (H * ksz, C), jnp.float32),
        "b_w":   0.1 * jax.random.normal(ks[3], (H * ksz,), jnp.float32),
        "dbias": 0.1 * jax.random.normal(ks[4], (C,), jnp.float32),
        "w_pw":  s * jax.random.normal(ks[5], (C_out, C), jnp.float32),
        "b_pw":  0.1 * jax.random.normal(ks[6], (C_out,), jnp.float32),
        "gamma": 1.0 + 0.1 * jax.random.normal(ks[7], (C_out,), jnp.float32),
        "beta":  0.1 * jax.random.normal(ks[8], (C_out,), jnp.float32),
    }


def reference(x_bct, params, wshare, ksz):
    """Pure-JAX f32 reference mirroring the PyTorch forward (eval mode)."""
    B, C, T = x_bct.shape
    H = wshare
    Ch = C // H
    pad = (ksz - 1) // 2
    x = jnp.transpose(x_bct, (0, 2, 1))                          # (B, T, C)
    lin = x @ params["w_lin"].T + params["b_lin"]
    g = lin[..., :C] * jax.nn.sigmoid(lin[..., C:])              # GLU
    w = g @ params["w_w"].T + params["b_w"]                      # (B, T, H*k)
    w = w.reshape(B, T, H, ksz).transpose(0, 2, 1, 3)            # (B, H, T, k)
    tt = jnp.arange(T)
    rel = tt[None, :] - tt[:, None] + pad                        # (T, T)
    band = (rel >= 0) & (rel < ksz)
    idx = jnp.clip(rel, 0, ksz - 1)
    gathered = jnp.take_along_axis(
        w, jnp.broadcast_to(idx[None, None], (B, H, T, T)), axis=-1)
    logits = jnp.where(band[None, None], gathered, -jnp.inf)
    attn = jax.nn.softmax(logits, axis=-1)                       # (B, H, T, T)
    g_h = g.reshape(B, T, H, Ch).transpose(0, 2, 1, 3)           # (B, H, T, Ch)
    y = jnp.einsum("bhtj,bhjc->bhtc", attn, g_h)
    y = y.transpose(0, 2, 1, 3).reshape(B, T, C) + params["dbias"]
    z = y @ params["w_pw"].T + params["b_pw"]                    # (B, T, C_out)
    mean = z.mean(axis=(1, 2), keepdims=True)
    var = ((z - mean) ** 2).mean(axis=(1, 2), keepdims=True)
    zn = (z - mean) / jnp.sqrt(var + 1e-5)
    out = zn * params["gamma"] + params["beta"]
    return out.transpose(0, 2, 1)                                # (B, C_out, T)


if __name__ == "__main__":
    B, C, C_out, H, ksz, T = 2, 16, 16, 4, 5, 16
    key = jax.random.PRNGKey(0)
    kx, kp = jax.random.split(key)
    x = jax.random.normal(kx, (B, C, T), dtype=jnp.float32)      # (batch, dim, seq)
    input_lengths = jnp.array([T, T - 4], dtype=jnp.int32)
    params = init_params(kp, C, C_out, H, ksz)

    out, out_lengths = contextnet_dconv(
        x, input_lengths, params, wshare=H, kernel_size=ksz, stride=1, padding=0)
    out = jax.block_until_ready(out)
    out_lengths = jax.block_until_ready(out_lengths)

    assert out.shape == (B, C_out, T), out.shape
    assert out_lengths.shape == (B,), out_lengths.shape

    ref = reference(x, params, H, ksz)
    max_err = float(jnp.max(jnp.abs(out - ref)))
    # bf16 MXU operands vs. f32 reference -> a few-% tolerance.
    assert jnp.allclose(out, ref, atol=3e-2, rtol=3e-2), f"max abs err {max_err}"

    print("KERNEL_OK")
</pallas_src>

<mosaic_0001>
module attributes {stable_mosaic.version = 11 : i64} {
  func.func @_dconv_kernel(%arg0: i32, %arg1: memref<16x32xbf16, #tpu.memory_space<vmem>>, %arg2: memref<5x32xf32, #tpu.memory_space<vmem>>, %arg3: memref<2x32xf32, #tpu.memory_space<vmem>>, %arg4: memref<32x16xbf16, #tpu.memory_space<vmem>>, %arg5: memref<32x1xf32, #tpu.memory_space<vmem>>, %arg6: memref<20x16xbf16, #tpu.memory_space<vmem>>, %arg7: memref<20x1xf32, #tpu.memory_space<vmem>>, %arg8: memref<16x1xf32, #tpu.memory_space<vmem>>, %arg9: memref<16x16xbf16, #tpu.memory_space<vmem>>, %arg10: memref<16x1xf32, #tpu.memory_space<vmem>>, %arg11: memref<16x1xf32, #tpu.memory_space<vmem>>, %arg12: memref<16x1xf32, #tpu.memory_space<vmem>>, %arg13: memref<16x32xf32, #tpu.memory_space<vmem>>) attributes {dimension_semantics = [#tpu.dimension_semantics<parallel>], iteration_bounds = array<i64: 1>, scalar_prefetch = 0 : i64, scratch_operands = 0 : i64, tpu.core_type = #tpu.core_type<tc>, window_params = [{transform_indices = @transform_0, window_bounds = array<i64: 16, 32>}, {pipeline_mode = #tpu.pipeline_mode<synchronous>, transform_indices = @transform_1, window_bounds = array<i64: 5, 32>}, {pipeline_mode = #tpu.pipeline_mode<synchronous>, transform_indices = @transform_2, window_bounds = array<i64: 2, 32>}, {pipeline_mode = #tpu.pipeline_mode<synchronous>, transform_indices = @transform_3, window_bounds = array<i64: 32, 16>}, {pipeline_mode = #tpu.pipeline_mode<synchronous>, transform_indices = @transform_4, window_bounds = array<i64: 32, 1>}, {pipeline_mode = #tpu.pipeline_mode<synchronous>, transform_indices = @transform_5, window_bounds = array<i64: 20, 16>}, {pipeline_mode = #tpu.pipeline_mode<synchronous>, transform_indices = @transform_6, window_bounds = array<i64: 20, 1>}, {pipeline_mode = #tpu.pipeline_mode<synchronous>, transform_indices = @transform_7, window_bounds = array<i64: 16, 1>}, {pipeline_mode = #tpu.pipeline_mode<synchronous>, transform_indices = @transform_8, window_bounds = array<i64: 16, 16>}, {pipeline_mode = #tpu.pipeline_mode<synchronous>, transform_indices = @transform_9, window_bounds = array<i64: 16, 1>}, {pipeline_mode = #tpu.pipeline_mode<synchronous>, transform_indices = @transform_10, window_bounds = array<i64: 16, 1>}, {pipeline_mode = #tpu.pipeline_mode<synchronous>, transform_indices = @transform_11, window_bounds = array<i64: 16, 1>}, {transform_indices = @transform_12, window_bounds = array<i64: 16, 32>}]} {
    %c0 = arith.constant 0 : index
    %c0_0 = arith.constant 0 : index
    %0 = vector.load %arg1[%c0, %c0_0] : memref<16x32xbf16, #tpu.memory_space<vmem>>, vector<16x32xbf16>
    %c0_1 = arith.constant 0 : index
    %c0_2 = arith.constant 0 : index
    %1 = vector.load %arg4[%c0_1, %c0_2] : memref<32x16xbf16, #tpu.memory_space<vmem>>, vector<32x16xbf16>
    %cst = arith.constant dense<0.000000e+00> : vector<32x32xf32>
    %2 = tpu.matmul %1, %0, %cst {dimension_numbers = #tpu.dot_dimension_numbers<[1], [0], [0], [1], [0, 0, 1, 1], [], []>} : vector<32x16xbf16>, vector<16x32xbf16>, vector<32x32xf32> -> vector<32x32xf32>
    %c0_3 = arith.constant 0 : index
    %c0_4 = arith.constant 0 : index
    %3 = vector.load %arg5[%c0_3, %c0_4] : memref<32x1xf32, #tpu.memory_space<vmem>>, vector<32x1xf32>
    %4 = vector.broadcast %3 : vector<32x1xf32> to vector<32x32xf32>
    %5 = arith.addf %2, %4 : vector<32x32xf32>
    %6 = vector.extract_strided_slice %5 {offsets = [0, 0], sizes = [16, 32], strides = [1, 1]} : vector<32x32xf32> to vector<16x32xf32>
    %7 = vector.extract_strided_slice %5 {offsets = [16, 0], sizes = [16, 32], strides = [1, 1]} : vector<32x32xf32> to vector<16x32xf32>
    %8 = arith.negf %7 : vector<16x32xf32>
    %9 = math.exp %8 : vector<16x32xf32>
    %cst_5 = arith.constant 1.000000e+00 : f32
    %10 = vector.broadcast %cst_5 : f32 to vector<16x32xf32>
    %11 = arith.addf %10, %9 : vector<16x32xf32>
    %12 = arith.divf %10, %11 : vector<16x32xf32>
    %13 = arith.mulf %6, %12 : vector<16x32xf32>
    %c0_6 = arith.constant 0 : index
    %c0_7 = arith.constant 0 : index
    %14 = vector.load %arg6[%c0_6, %c0_7] : memref<20x16xbf16, #tpu.memory_space<vmem>>, vector<20x16xbf16>
    %15 = arith.truncf %13 : vector<16x32xf32> to vector<16x32xbf16>
    %cst_8 = arith.constant dense<0.000000e+00> : vector<20x32xf32>
    %16 = tpu.matmul %14, %15, %cst_8 {dimension_numbers = #tpu.dot_dimension_numbers<[1], [0], [0], [1], [0, 0, 1, 1], [], []>} : vector<20x16xbf16>, vector<16x32xbf16>, vector<20x32xf32> -> vector<20x32xf32>
    %c0_9 = arith.constant 0 : index
    %c0_10 = arith.constant 0 : index
    %17 = vector.load %arg7[%c0_9, %c0_10] : memref<20x1xf32, #tpu.memory_space<vmem>>, vector<20x1xf32>
    %18 = vector.broadcast %17 : vector<20x1xf32> to vector<20x32xf32>
    %19 = arith.addf %16, %18 : vector<20x32xf32>
    %20 = vector.extract_strided_slice %19 {offsets = [8, 0], sizes = [4, 32], strides = [1, 1]} : vector<20x32xf32> to vector<4x32xf32>
    %21 = vector.extract_strided_slice %19 {offsets = [0, 0], sizes = [4, 32], strides = [1, 1]} : vector<20x32xf32> to vector<4x32xf32>
    %c0_11 = arith.constant 0 : index
    %c0_12 = arith.constant 0 : index
    %22 = vector.load %arg2[%c0_11, %c0_12] : memref<5x32xf32, #tpu.memory_space<vmem>>, vector<1x32xf32>
    %23 = vector.broadcast %22 : vector<1x32xf32> to vector<4x32xf32>
    %24 = arith.addf %21, %23 : vector<4x32xf32>
    %25 = arith.maximumf %20, %24 : vector<4x32xf32>
    %26 = vector.extract_strided_slice %19 {offsets = [4, 0], sizes = [4, 32], strides = [1, 1]} : vector<20x32xf32> to vector<4x32xf32>
    %c1 = arith.constant 1 : index
    %c0_13 = arith.constant 0 : index
    %27 = vector.load %arg2[%c1, %c0_13] : memref<5x32xf32, #tpu.memory_space<vmem>>, vector<1x32xf32>
    %28 = vector.broadcast %27 : vector<1x32xf32> to vector<4x32xf32>
    %29 = arith.addf %26, %28 : vector<4x32xf32>
    %30 = arith.maximumf %25, %29 : vector<4x32xf32>
    %31 = vector.extract_strided_slice %19 {offsets = [12, 0], sizes = [4, 32], strides = [1, 1]} : vector<20x32xf32> to vector<4x32xf32>
    %c3 = arith.constant 3 : index
    %c0_14 = arith.constant 0 : index
    %32 = vector.load %arg2[%c3, %c0_14] : memref<5x32xf32, #tpu.memory_space<vmem>>, vector<1x32xf32>
    %33 = vector.broadcast %32 : vector<1x32xf32> to vector<4x32xf32>
    %34 = arith.addf %31, %33 : vector<4x32xf32>
    %35 = arith.maximumf %30, %34 : vector<4x32xf32>
    %36 = vector.extract_strided_slice %19 {offsets = [16, 0], sizes = [4, 32], strides = [1, 1]} : vector<20x32xf32> to vector<4x32xf32>
    %c4 = arith.constant 4 : index
    %c0_15 = arith.constant 0 : index
    %37 = vector.load %arg2[%c4, %c0_15] : memref<5x32xf32, #tpu.memory_space<vmem>>, vector<1x32xf32>
    %38 = vector.broadcast %37 : vector<1x32xf32> to vector<4x32xf32>
    %39 = arith.addf %36, %38 : vector<4x32xf32>
    %40 = arith.maximumf %35, %39 : vector<4x32xf32>
    %cst_16 = arith.constant 0.000000e+00 : f32
    %41 = vector.broadcast %cst_16 : f32 to vector<4x32xf32>
    %cst_17 = arith.constant 0.000000e+00 : f32
    %42 = vector.broadcast %cst_17 : f32 to vector<16x32xf32>
    %43 = vector.extract_strided_slice %19 {offsets = [0, 0], sizes = [4, 32], strides = [1, 1]} : vector<20x32xf32> to vector<4x32xf32>
    %c0_18 = arith.constant 0 : index
    %c0_19 = arith.constant 0 : index
    %44 = vector.load %arg2[%c0_18, %c0_19] : memref<5x32xf32, #tpu.memory_space<vmem>>, vector<1x32xf32>
    %45 = vector.broadcast %44 : vector<1x32xf32> to vector<4x32xf32>
    %46 = arith.addf %43, %45 : vector<4x32xf32>
    %47 = arith.subf %46, %40 : vector<4x32xf32>
    %48 = math.exp %47 : vector<4x32xf32>
    %49 = arith.addf %41, %48 : vector<4x32xf32>
    %50 = vector.extract_strided_slice %13 {offsets = [0, 30], sizes = [16, 2], strides = [1, 1]} : vector<16x32xf32> to vector<16x2xf32>
    %51 = vector.extract_strided_slice %13 {offsets = [0, 0], sizes = [16, 30], strides = [1, 1]} : vector<16x32xf32> to vector<16x30xf32>
    %52 = tpu.concatenate %50, %51 in 1 : vector<16x2xf32>, vector<16x30xf32> -> vector<16x32xf32>
    %53 = tpu.concatenate %48, %48, %48, %48 in 0 : vector<4x32xf32>, vector<4x32xf32>, vector<4x32xf32>, vector<4x32xf32> -> vector<16x32xf32>
    %54 = arith.mulf %53, %52 : vector<16x32xf32>
    %55 = arith.addf %42, %54 : vector<16x32xf32>
    %56 = vector.extract_strided_slice %19 {offsets = [4, 0], sizes = [4, 32], strides = [1, 1]} : vector<20x32xf32> to vector<4x32xf32>
    %c1_20 = arith.constant 1 : index
    %c0_21 = arith.constant 0 : index
    %57 = vector.load %arg2[%c1_20, %c0_21] : memref<5x32xf32, #tpu.memory_space<vmem>>, vector<1x32xf32>
    %58 = vector.broadcast %57 : vector<1x32xf32> to vector<4x32xf32>
    %59 = arith.addf %56, %58 : vector<4x32xf32>
    %60 = arith.subf %59, %40 : vector<4x32xf32>
    %61 = math.exp %60 : vector<4x32xf32>
    %62 = arith.addf %49, %61 : vector<4x32xf32>
    %63 = vector.extract_strided_slice %13 {offsets = [0, 31], sizes = [16, 1], strides = [1, 1]} : vector<16x32xf32> to vector<16x1xf32>
    %64 = vector.extract_strided_slice %13 {offsets = [0, 0], sizes = [16, 31], strides = [1, 1]} : vector<16x32xf32> to vector<16x31xf32>
    %65 = tpu.concatenate %63, %64 in 1 : vector<16x1xf32>, vector<16x31xf32> -> vector<16x32xf32>
    %66 = tpu.concatenate %61, %61, %61, %61 in 0 : vector<4x32xf32>, vector<4x32xf32>, vector<4x32xf32>, vector<4x32xf32> -> vector<16x32xf32>
    %67 = arith.mulf %66, %65 : vector<16x32xf32>
    %68 = arith.addf %55, %67 : vector<16x32xf32>
    %69 = vector.extract_strided_slice %19 {offsets = [8, 0], sizes = [4, 32], strides = [1, 1]} : vector<20x32xf32> to vector<4x32xf32>
    %c2 = arith.constant 2 : index
    %c0_22 = arith.constant 0 : index
    %70 = vector.load %arg2[%c2, %c0_22] : memref<5x32xf32, #tpu.memory_space<vmem>>, vector<1x32xf32>
    %71 = vector.broadcast %70 : vector<1x32xf32> to vector<4x32xf32>
    %72 = arith.addf %69, %71 : vector<4x32xf32>
    %73 = arith.subf %72, %40 : vector<4x32xf32>
    %74 = math.exp %73 : vector<4x32xf32>
    %75 = arith.addf %62, %74 : vector<4x32xf32>
    %76 = tpu.concatenate %74, %74, %74, %74 in 0 : vector<4x32xf32>, vector<4x32xf32>, vector<4x32xf32>, vector<4x32xf32> -> vector<16x32xf32>
    %77 = arith.mulf %76, %13 : vector<16x32xf32>
    %78 = arith.addf %68, %77 : vector<16x32xf32>
    %79 = vector.extract_strided_slice %19 {offsets = [12, 0], sizes = [4, 32], strides = [1, 1]} : vector<20x32xf32> to vector<4x32xf32>
    %c3_23 = arith.constant 3 : index
    %c0_24 = arith.constant 0 : index
    %80 = vector.load %arg2[%c3_23, %c0_24] : memref<5x32xf32, #tpu.memory_space<vmem>>, vector<1x32xf32>
    %81 = vector.broadcast %80 : vector<1x32xf32> to vector<4x32xf32>
    %82 = arith.addf %79, %81 : vector<4x32xf32>
    %83 = arith.subf %82, %40 : vector<4x32xf32>
    %84 = math.exp %83 : vector<4x32xf32>
    %85 = arith.addf %75, %84 : vector<4x32xf32>
    %86 = vector.extract_strided_slice %13 {offsets = [0, 1], sizes = [16, 31], strides = [1, 1]} : vector<16x32xf32> to vector<16x31xf32>
    %87 = vector.extract_strided_slice %13 {offsets = [0, 0], sizes = [16, 1], strides = [1, 1]} : vector<16x32xf32> to vector<16x1xf32>
    %88 = tpu.concatenate %86, %87 in 1 : vector<16x31xf32>, vector<16x1xf32> -> vector<16x32xf32>
    %89 = tpu.concatenate %84, %84, %84, %84 in 0 : vector<4x32xf32>, vector<4x32xf32>, vector<4x32xf32>, vector<4x32xf32> -> vector<16x32xf32>
    %90 = arith.mulf %89, %88 : vector<16x32xf32>
    %91 = arith.addf %78, %90 : vector<16x32xf32>
    %92 = vector.extract_strided_slice %19 {offsets = [16, 0], sizes = [4, 32], strides = [1, 1]} : vector<20x32xf32> to vector<4x32xf32>
    %c4_25 = arith.constant 4 : index
    %c0_26 = arith.constant 0 : index
    %93 = vector.load %arg2[%c4_25, %c0_26] : memref<5x32xf32, #tpu.memory_space<vmem>>, vector<1x32xf32>
    %94 = vector.broadcast %93 : vector<1x32xf32> to vector<4x32xf32>
    %95 = arith.addf %92, %94 : vector<4x32xf32>
    %96 = arith.subf %95, %40 : vector<4x32xf32>
    %97 = math.exp %96 : vector<4x32xf32>
    %98 = arith.addf %85, %97 : vector<4x32xf32>
    %99 = vector.extract_strided_slice %13 {offsets = [0, 2], sizes = [16, 30], strides = [1, 1]} : vector<16x32xf32> to vector<16x30xf32>
    %100 = vector.extract_strided_slice %13 {offsets = [0, 0], sizes = [16, 2], strides = [1, 1]} : vector<16x32xf32> to vector<16x2xf32>
    %101 = tpu.concatenate %99, %100 in 1 : vector<16x30xf32>, vector<16x2xf32> -> vector<16x32xf32>
    %102 = tpu.concatenate %97, %97, %97, %97 in 0 : vector<4x32xf32>, vector<4x32xf32>, vector<4x32xf32>, vector<4x32xf32> -> vector<16x32xf32>
    %103 = arith.mulf %102, %101 : vector<16x32xf32>
    %104 = arith.addf %91, %103 : vector<16x32xf32>
    %105 = tpu.reciprocal %98 : vector<4x32xf32> -> vector<4x32xf32>
    %106 = tpu.concatenate %105, %105, %105, %105 in 0 : vector<4x32xf32>, vector<4x32xf32>, vector<4x32xf32>, vector<4x32xf32> -> vector<16x32xf32>
    %107 = arith.mulf %104, %106 : vector<16x32xf32>
    %c0_27 = arith.constant 0 : index
    %c0_28 = arith.constant 0 : index
    %108 = vector.load %arg8[%c0_27, %c0_28] : memref<16x1xf32, #tpu.memory_space<vmem>>, vector<16x1xf32>
    %109 = vector.broadcast %108 : vector<16x1xf32> to vector<16x32xf32>
    %110 = arith.addf %107, %109 : vector<16x32xf32>
    %c0_29 = arith.constant 0 : index
    %c0_30 = arith.constant 0 : index
    %111 = vector.load %arg9[%c0_29, %c0_30] : memref<16x16xbf16, #tpu.memory_space<vmem>>, vector<16x16xbf16>
    %112 = arith.truncf %110 : vector<16x32xf32> to vector<16x32xbf16>
    %cst_31 = arith.constant dense<0.000000e+00> : vector<16x32xf32>
    %113 = tpu.matmul %111, %112, %cst_31 {dimension_numbers = #tpu.dot_dimension_numbers<[1], [0], [0], [1], [0, 0, 1, 1], [], []>} : vector<16x16xbf16>, vector<16x32xbf16>, vector<16x32xf32> -> vector<16x32xf32>
    %c0_32 = arith.constant 0 : index
    %c0_33 = arith.constant 0 : index
    %114 = vector.load %arg10[%c0_32, %c0_33] : memref<16x1xf32, #tpu.memory_space<vmem>>, vector<16x1xf32>
    %115 = vector.broadcast %114 : vector<16x1xf32> to vector<16x32xf32>
    %116 = arith.addf %113, %115 : vector<16x32xf32>
    %cst_34 = arith.constant dense<0.000000e+00> : vector<32xf32>
    %117 = vector.multi_reduction <add>, %116, %cst_34 [0] : vector<16x32xf32> to vector<32xf32>
    %118 = vector.shape_cast %117 : vector<32xf32> to vector<1x32xf32>
    %119 = arith.mulf %116, %116 : vector<16x32xf32>
    %cst_35 = arith.constant dense<0.000000e+00> : vector<32xf32>
    %120 = vector.multi_reduction <add>, %119, %cst_35 [0] : vector<16x32xf32> to vector<32xf32>
    %121 = vector.shape_cast %120 : vector<32xf32> to vector<1x32xf32>
    %cst_36 = arith.constant 0.000000e+00 : f32
    %122 = vector.broadcast %cst_36 : f32 to vector<1x32xf32>
    %cst_37 = arith.constant 0.000000e+00 : f32
    %123 = vector.broadcast %cst_37 : f32 to vector<1x32xf32>
    %c0_38 = arith.constant 0 : index
    %c0_39 = arith.constant 0 : index
    %124 = vector.load %arg3[%c0_38, %c0_39] : memref<2x32xf32, #tpu.memory_space<vmem>>, vector<1x32xf32>
    %125 = arith.mulf %124, %118 : vector<1x32xf32>
    %126 = vector.shape_cast %125 : vector<1x32xf32> to vector<1x1x32xf32>
    %cst_40 = arith.constant dense<0.000000e+00> : vector<1xf32>
    %127 = vector.multi_reduction <add>, %126, %cst_40 [1, 2] : vector<1x1x32xf32> to vector<1xf32>
    %128 = vector.shape_cast %127 : vector<1xf32> to vector<1x1x1xf32>
    %129 = vector.extract %128[0, 0, 0] : f32 from vector<1x1x1xf32>
    %130 = vector.broadcast %129 : f32 to vector<1x1xf32>
    %cst_41 = arith.constant 3.906250e-03 : f32
    %131 = vector.broadcast %cst_41 : f32 to vector<1x1xf32>
    %132 = arith.mulf %130, %131 : vector<1x1xf32>
    %133 = arith.mulf %124, %121 : vector<1x32xf32>
    %134 = vector.shape_cast %133 : vector<1x32xf32> to vector<1x1x32xf32>
    %cst_42 = arith.constant dense<0.000000e+00> : vector<1xf32>
    %135 = vector.multi_reduction <add>, %134, %cst_42 [1, 2] : vector<1x1x32xf32> to vector<1xf32>
    %136 = vector.shape_cast %135 : vector<1xf32> to vector<1x1x1xf32>
    %137 = vector.extract %136[0, 0, 0] : f32 from vector<1x1x1xf32>
    %138 = vector.broadcast %137 : f32 to vector<1x1xf32>
    %cst_43 = arith.constant 3.906250e-03 : f32
    %139 = vector.broadcast %cst_43 : f32 to vector<1x1xf32>
    %140 = arith.mulf %138, %139 : vector<1x1xf32>
    %141 = arith.mulf %132, %132 : vector<1x1xf32>
    %142 = arith.subf %140, %141 : vector<1x1xf32>
    %cst_44 = arith.constant 0.000000e+00 : f32
    %143 = vector.broadcast %cst_44 : f32 to vector<1x1xf32>
    %144 = arith.maximumf %142, %143 : vector<1x1xf32>
    %cst_45 = arith.constant 9.99999974E-6 : f32
    %145 = vector.broadcast %cst_45 : f32 to vector<1x1xf32>
    %146 = arith.addf %144, %145 : vector<1x1xf32>
    %147 = math.rsqrt %146 : vector<1x1xf32>
    %148 = vector.broadcast %132 : vector<1x1xf32> to vector<1x32xf32>
    %149 = arith.mulf %124, %148 : vector<1x32xf32>
    %150 = arith.addf %122, %149 : vector<1x32xf32>
    %151 = vector.broadcast %147 : vector<1x1xf32> to vector<1x32xf32>
    %152 = arith.mulf %124, %151 : vector<1x32xf32>
    %153 = arith.addf %123, %152 : vector<1x32xf32>
    %c1_46 = arith.constant 1 : index
    %c0_47 = arith.constant 0 : index
    %154 = vector.load %arg3[%c1_46, %c0_47] : memref<2x32xf32, #tpu.memory_space<vmem>>, vector<1x32xf32>
    %155 = arith.mulf %154, %118 : vector<1x32xf32>
    %156 = vector.shape_cast %155 : vector<1x32xf32> to vector<1x1x32xf32>
    %cst_48 = arith.constant dense<0.000000e+00> : vector<1xf32>
    %157 = vector.multi_reduction <add>, %156, %cst_48 [1, 2] : vector<1x1x32xf32> to vector<1xf32>
    %158 = vector.shape_cast %157 : vector<1xf32> to vector<1x1x1xf32>
    %159 = vector.extract %158[0, 0, 0] : f32 from vector<1x1x1xf32>
    %160 = vector.broadcast %159 : f32 to vector<1x1xf32>
    %cst_49 = arith.constant 3.906250e-03 : f32
    %161 = vector.broadcast %cst_49 : f32 to vector<1x1xf32>
    %162 = arith.mulf %160, %161 : vector<1x1xf32>
    %163 = arith.mulf %154, %121 : vector<1x32xf32>
    %164 = vector.shape_cast %163 : vector<1x32xf32> to vector<1x1x32xf32>
    %cst_50 = arith.constant dense<0.000000e+00> : vector<1xf32>
    %165 = vector.multi_reduction <add>, %164, %cst_50 [1, 2] : vector<1x1x32xf32> to vector<1xf32>
    %166 = vector.shape_cast %165 : vector<1xf32> to vector<1x1x1xf32>
    %167 = vector.extract %166[0, 0, 0] : f32 from vector<1x1x1xf32>
    %168 = vector.broadcast %167 : f32 to vector<1x1xf32>
    %cst_51 = arith.constant 3.906250e-03 : f32
    %169 = vector.broadcast %cst_51 : f32 to vector<1x1xf32>
    %170 = arith.mulf %168, %169 : vector<1x1xf32>
    %171 = arith.mulf %162, %162 : vector<1x1xf32>
    %172 = arith.subf %170, %171 : vector<1x1xf32>
    %cst_52 = arith.constant 0.000000e+00 : f32
    %173 = vector.broadcast %cst_52 : f32 to vector<1x1xf32>
    %174 = arith.maximumf %172, %173 : vector<1x1xf32>
    %cst_53 = arith.constant 9.99999974E-6 : f32
    %175 = vector.broadcast %cst_53 : f32 to vector<1x1xf32>
    %176 = arith.addf %174, %175 : vector<1x1xf32>
    %177 = math.rsqrt %176 : vector<1x1xf32>
    %178 = vector.broadcast %162 : vector<1x1xf32> to vector<1x32xf32>
    %179 = arith.mulf %154, %178 : vector<1x32xf32>
    %180 = arith.addf %150, %179 : vector<1x32xf32>
    %181 = vector.broadcast %177 : vector<1x1xf32> to vector<1x32xf32>
    %182 = arith.mulf %154, %181 : vector<1x32xf32>
    %183 = arith.addf %153, %182 : vector<1x32xf32>
    %184 = vector.broadcast %180 : vector<1x32xf32> to vector<16x32xf32>
    %185 = arith.subf %116, %184 : vector<16x32xf32>
    %186 = vector.broadcast %183 : vector<1x32xf32> to vector<16x32xf32>
    %187 = arith.mulf %185, %186 : vector<16x32xf32>
    %c0_54 = arith.constant 0 : index
    %c0_55 = arith.constant 0 : index
    %188 = vector.load %arg11[%c0_54, %c0_55] : memref<16x1xf32, #tpu.memory_space<vmem>>, vector<16x1xf32>
    %189 = vector.broadcast %188 : vector<16x1xf32> to vector<16x32xf32>
    %190 = arith.mulf %187, %189 : vector<16x32xf32>
    %c0_56 = arith.constant 0 : index
    %c0_57 = arith.constant 0 : index
    %191 = vector.load %arg12[%c0_56, %c0_57] : memref<16x1xf32, #tpu.memory_space<vmem>>, vector<16x1xf32>
    %192 = vector.broadcast %191 : vector<16x1xf32> to vector<16x32xf32>
    %193 = arith.addf %190, %192 : vector<16x32xf32>
    %c0_58 = arith.constant 0 : index
    %c0_59 = arith.constant 0 : index
    %194 = vector.load %arg13[%c0_58, %c0_59] : memref<16x32xf32, #tpu.memory_space<vmem>>, vector<16x32xf32>
    tpu.vector_store %arg13[%c0_58, %c0_59], %193 {strides = array<i32>} : memref<16x32xf32, #tpu.memory_space<vmem>>, vector<16x32xf32>,
    return
  }
  func.func @transform_0(%arg0: i32) -> (i32, i32) {
    %c0_i32 = arith.constant 0 : i32
    %c0_i32_0 = arith.constant 0 : i32
    return %c0_i32, %arg0 : i32, i32
  }
  func.func @transform_1(%arg0: i32) -> (i32, i32) {
    %c0_i32 = arith.constant 0 : i32
    %c0_i32_0 = arith.constant 0 : i32
    %c0_i32_1 = arith.constant 0 : i32
    return %c0_i32, %c0_i32_0 : i32, i32
  }
  func.func @transform_2(%arg0: i32) -> (i32, i32) {
    %c0_i32 = arith.constant 0 : i32
    %c0_i32_0 = arith.constant 0 : i32
    %c0_i32_1 = arith.constant 0 : i32
    return %c0_i32, %c0_i32_0 : i32, i32
  }
  func.func @transform_3(%arg0: i32) -> (i32, i32) {
    %c0_i32 = arith.constant 0 : i32
    %c0_i32_0 = arith.constant 0 : i32
    %c0_i32_1 = arith.constant 0 : i32
    return %c0_i32, %c0_i32_0 : i32, i32
  }
  func.func @transform_4(%arg0: i32) -> (i32, i32) {
    %c0_i32 = arith.constant 0 : i32
    %c0_i32_0 = arith.constant 0 : i32
    %c0_i32_1 = arith.constant 0 : i32
    return %c0_i32, %c0_i32_0 : i32, i32
  }
  func.func @transform_5(%arg0: i32) -> (i32, i32) {
    %c0_i32 = arith.constant 0 : i32
    %c0_i32_0 = arith.constant 0 : i32
    %c0_i32_1 = arith.constant 0 : i32
    return %c0_i32, %c0_i32_0 : i32, i32
  }
  func.func @transform_6(%arg0: i32) -> (i32, i32) {
    %c0_i32 = arith.constant 0 : i32
    %c0_i32_0 = arith.constant 0 : i32
    %c0_i32_1 = arith.constant 0 : i32
    return %c0_i32, %c0_i32_0 : i32, i32
  }
  func.func @transform_7(%arg0: i32) -> (i32, i32) {
    %c0_i32 = arith.constant 0 : i32
    %c0_i32_0 = arith.constant 0 : i32
    %c0_i32_1 = arith.constant 0 : i32
    return %c0_i32, %c0_i32_0 : i32, i32
  }
  func.func @transform_8(%arg0: i32) -> (i32, i32) {
    %c0_i32 = arith.constant 0 : i32
    %c0_i32_0 = arith.constant 0 : i32
    %c0_i32_1 = arith.constant 0 : i32
    return %c0_i32, %c0_i32_0 : i32, i32
  }
  func.func @transform_9(%arg0: i32) -> (i32, i32) {
    %c0_i32 = arith.constant 0 : i32
    %c0_i32_0 = arith.constant 0 : i32
    %c0_i32_1 = arith.constant 0 : i32
    return %c0_i32, %c0_i32_0 : i32, i32
  }
  func.func @transform_10(%arg0: i32) -> (i32, i32) {
    %c0_i32 = arith.constant 0 : i32
    %c0_i32_0 = arith.constant 0 : i32
    %c0_i32_1 = arith.constant 0 : i32
    return %c0_i32, %c0_i32_0 : i32, i32
  }
  func.func @transform_11(%arg0: i32) -> (i32, i32) {
    %c0_i32 = arith.constant 0 : i32
    %c0_i32_0 = arith.constant 0 : i32
    %c0_i32_1 = arith.constant 0 : i32
    return %c0_i32, %c0_i32_0 : i32, i32
  }
  func.func @transform_12(%arg0: i32) -> (i32, i32) {
    %c0_i32 = arith.constant 0 : i32
    %c0_i32_0 = arith.constant 0 : i32
    return %c0_i32, %arg0 : i32, i32
  }
}

</mosaic_0001>

<llo_original>
// kernel: tpu_custom_call.1
$region0: #{tpu_custom_call.1}
  #allocation0 [shape = 'u32[]', space=smem, size = 0x4, offset = 0x4, fixed_abs, tag = 'smem constant byte address 0x4 - core index']
  #allocation1 [shape = 'u32[144,128]{1,0:T(1,128)}', space=vmem, size = 0x12000, scoped, tag = 'internal scratch']
  %s0 = inlined_call_operand.vmem [shape: bf16[16,32], index: 0, kind: input, shape index: {}]
  %s1 = inlined_call_operand.vmem [shape: f32[5,32], index: 1, kind: input, shape index: {}]
  %s2 = inlined_call_operand.vmem [shape: f32[2,32], index: 2, kind: input, shape index: {}]
  %s3 = inlined_call_operand.vmem [shape: bf16[32,16], index: 3, kind: input, shape index: {}]
  %s4 = inlined_call_operand.vmem [shape: f32[32,1], index: 4, kind: input, shape index: {}]
  %s5 = inlined_call_operand.vmem [shape: bf16[20,16], index: 5, kind: input, shape index: {}]
  %s6 = inlined_call_operand.vmem [shape: f32[20,1], index: 6, kind: input, shape index: {}]
  %s7 = inlined_call_operand.vmem [shape: f32[16,1], index: 7, kind: input, shape index: {}]
  %s8 = inlined_call_operand.vmem [shape: bf16[16,16], index: 8, kind: input, shape index: {}]
  %s9 = inlined_call_operand.vmem [shape: f32[16,1], index: 9, kind: input, shape index: {}]
  %s10 = inlined_call_operand.vmem [shape: f32[16,1], index: 10, kind: input, shape index: {}]
  %s11 = inlined_call_operand.vmem [shape: f32[16,1], index: 11, kind: input, shape index: {}]
  %s12 = inlined_call_operand.hbm [shape: f32[16,32], index: 12, kind: output, shape index: {}]
  %s13 = sld [smem:[#allocation0]]
  $region58: #{tpu_custom_call.1} parent=0
    _
  %s15 = ssub.s32 1, %s13
  %s16 = scalar_select 0, %s15, %s13
  $region1: #{tpu_custom_call.1} parent=0
    #allocation2 [shape = 'u8[8192]{0}', space=vmem, size = 0x2000, scoped, tag = 'output window, operand 0, single buffered']
    #allocation3 [shape = 's32[1]{0}', space=sflag, size = 0x4, scoped, tag = 'scoped memory for tpu_custom_call.1']
    %17 = vsyncpa [#allocation3], 0
    // Predicated region
    $region2: #{tpu_custom_call.1} parent=1 // pred_check
      _
    $region3: #{tpu_custom_call.1} parent=1 // pred_check_branch
      %19 = sbr.rel (0) target = $region5
    $region4: #{tpu_custom_call.1} parent=1 // pred_region
      _
    $region5: #{tpu_custom_call.1} parent=1 // pred_fallthru
      _
    // Predicated region
    $region6: #{tpu_custom_call.1} parent=1 // pred_check
      _
    $region7: #{tpu_custom_call.1} parent=1 // pred_check_branch
      %21 = sbr.rel (0) target = $region9
    $region8: #{tpu_custom_call.1} parent=1 // pred_region
      _
    $region9: #{tpu_custom_call.1} parent=1 // pred_fallthru
      _
    // Predicated region
    $region10: #{tpu_custom_call.1} parent=1 // pred_check
      _
    $region11: #{tpu_custom_call.1} parent=1 // pred_check_branch
      %23 = sbr.rel (0) target = $region13
    $region12: #{tpu_custom_call.1} parent=1 // pred_region
      _
    $region13: #{tpu_custom_call.1} parent=1 // pred_fallthru
      _
    // Predicated region
    $region14: #{tpu_custom_call.1} parent=1 // pred_check
      _
    $region15: #{tpu_custom_call.1} parent=1 // pred_check_branch
      %25 = sbr.rel (0) target = $region17
    $region16: #{tpu_custom_call.1} parent=1 // pred_region
      _
    $region17: #{tpu_custom_call.1} parent=1 // pred_fallthru
      _
    // Predicated region
    $region18: #{tpu_custom_call.1} parent=1 // pred_check
      _
    $region19: #{tpu_custom_call.1} parent=1 // pred_check_branch
      %27 = sbr.rel (0) target = $region21
    $region20: #{tpu_custom_call.1} parent=1 // pred_region
      _
    $region21: #{tpu_custom_call.1} parent=1 // pred_fallthru
      _
    // Predicated region
    $region22: #{tpu_custom_call.1} parent=1 // pred_check
      _
    $region23: #{tpu_custom_call.1} parent=1 // pred_check_branch
      %29 = sbr.rel (0) target = $region25
    $region24: #{tpu_custom_call.1} parent=1 // pred_region
      _
    $region25: #{tpu_custom_call.1} parent=1 // pred_fallthru
      _
    // Predicated region
    $region26: #{tpu_custom_call.1} parent=1 // pred_check
      _
    $region27: #{tpu_custom_call.1} parent=1 // pred_check_branch
      %31 = sbr.rel (0) target = $region29
    $region28: #{tpu_custom_call.1} parent=1 // pred_region
      _
    $region29: #{tpu_custom_call.1} parent=1 // pred_fallthru
      _
    // Predicated region
    $region30: #{tpu_custom_call.1} parent=1 // pred_check
      _
    $region31: #{tpu_custom_call.1} parent=1 // pred_check_branch
      %33 = sbr.rel (0) target = $region33
    $region32: #{tpu_custom_call.1} parent=1 // pred_region
      _
    $region33: #{tpu_custom_call.1} parent=1 // pred_fallthru
      _
    // Predicated region
    $region34: #{tpu_custom_call.1} parent=1 // pred_check
      _
    $region35: #{tpu_custom_call.1} parent=1 // pred_check_branch
      %35 = sbr.rel (0) target = $region37
    $region36: #{tpu_custom_call.1} parent=1 // pred_region
      _
    $region37: #{tpu_custom_call.1} parent=1 // pred_fallthru
      _
    // Predicated region
    $region38: #{tpu_custom_call.1} parent=1 // pred_check
      _
    $region39: #{tpu_custom_call.1} parent=1 // pred_check_branch
      %37 = sbr.rel (0) target = $region41
    $region40: #{tpu_custom_call.1} parent=1 // pred_region
      _
    $region41: #{tpu_custom_call.1} parent=1 // pred_fallthru
      _
    // Predicated region
    $region42: #{tpu_custom_call.1} parent=1 // pred_check
      _
    $region43: #{tpu_custom_call.1} parent=1 // pred_check_branch
      %39 = sbr.rel (0) target = $region45
    $region44: #{tpu_custom_call.1} parent=1 // pred_region
      _
    $region45: #{tpu_custom_call.1} parent=1 // pred_fallthru
      _
    // Predicated region
    $region46: #{tpu_custom_call.1} parent=1 // pred_check
      _
    $region47: #{tpu_custom_call.1} parent=1 // pred_check_branch
      %41 = sbr.rel (0) target = $region49
    $region48: #{tpu_custom_call.1} parent=1 // pred_region
      _
    $region49: #{tpu_custom_call.1} parent=1 // pred_fallthru
      _
    %v43 = vld [vmem:[%s0] sm:$0xf]
    %v44 = vld [vmem:[%s0 + $0x4] sm:$0xf]
    %v45 = vld [vmem:[%s3] sm:$0xf]
    %v46 = vld [vmem:[%s3 + $0x4] sm:$0xf]
    %v47 = vld [vmem:[%s3 + $0x8] sm:$0xf]
    %v48 = vld [vmem:[%s3 + $0xc] sm:$0xf]
    %v49 = vld [vmem:[%s4] sm:$0xff]
    %v50 = vld [vmem:[%s4 + $0x8] sm:$0xff]
    %v51 = vld [vmem:[%s4 + $0x10] sm:$0xff]
    %v52 = vld [vmem:[%s4 + $0x18] sm:$0xff]
    %54 = vset.pattern.permute.xlu0 0
    %55 = vperm.xlu0 %54, %v49
    %v56 = vpop.permute.xlu0 %55
    %59 = vset.pattern.permute.xlu0 0
    %60 = vperm.xlu0 %59, %v50
    %v61 = vpop.permute.xlu0 %60
    %64 = vset.pattern.permute.xlu0 0
    %65 = vperm.xlu0 %64, %v51
    %v66 = vpop.permute.xlu0 %65
    %69 = vset.pattern.permute.xlu0 0
    %70 = vperm.xlu0 %69, %v52
    %v71 = vpop.permute.xlu0 %70
    %v77 = vunpack.c.l.b16 %v45
    %v78 = vunpack.c.l.b16 %v46
    %v79 = vunpack.c.l.b16 %v47
    %v80 = vunpack.c.l.b16 %v48
    %v81 = vpack.c.b16 %v78, %v77
    %v82 = vpack.c.b16 %v80, %v79
    %v85 = vunpack.c.l.b16 %v43
    %v86 = vunpack.c.l.b16 %v44
    %v87 = vpack.c.b16 %v86, %v85
    %vm89 = vcmask 130048
    %v91 = vsel %vm89, %v81, 0
    %v94 = vsel %vm89, %v82, 0
    %96 = vmatprep.subr.bf16.mxu0 0
    %97 = vmatpush1.bf16.msra.mxu0 0
    %98 = vmatprep.subr.bf16.mxu0 0
    %99 = vmatpush1.bf16.msra.mxu0 0
    %100 = vmatprep.subr.bf16.mxu0 0
    %101 = vmatpush1.bf16.msra.mxu0 0
    %102 = vmatprep.subr.bf16.mxu0 0
    %103 = vmatpush1.bf16.msra.mxu0 0
    %104 = vmatprep.subr.bf16.mxu0 0
    %105 = vmatpush1.bf16.msra.mxu0 0
    %106 = vmatprep.subr.bf16.mxu0 0
    %107 = vmatpush1.bf16.msra.mxu0 0
    %108 = vmatprep.subr.bf16.mxu0 0
    %109 = vmatpush1.bf16.msra.mxu0 0
    %110 = vmatprep.subr.bf16.mxu0 0
    %111 = vmatpush1.bf16.msra.mxu0 %v87
    %112 = vmatprep.subr.bf16.mxu0 0
    %113 = vmatpush2.bf16.msra.mxu0 0
    %114 = vmatprep.subr.bf16.mxu0 0
    %115 = vmatpush2.bf16.msra.mxu0 0
    %116 = vmatprep.subr.bf16.mxu0 0
    %117 = vmatpush2.bf16.msra.mxu0 0
    %118 = vmatprep.subr.bf16.mxu0 0
    %119 = vmatpush2.bf16.msra.mxu0 0
    %120 = vmatprep.subr.bf16.mxu0 0
    %121 = vmatpush2.bf16.msra.mxu0 0
    %122 = vmatprep.subr.bf16.mxu0 0
    %123 = vmatpush2.bf16.msra.mxu0 0
    %124 = vmatprep.subr.bf16.mxu0 0
    %125 = vmatpush2.bf16.msra.mxu0 0
    %126 = vmatprep.subr.bf16.mxu0 0
    %127 = vmatpush2.bf16.msra.mxu0 0
    %128 = vmatprep.mubr.bf16.mxu0 0
    %129 = vmatmul.mubr.bf16.gmra.mxu0 %v91
    %v130 = vpop.f32.mrf.mxu0
    %v131 = vadd.f32 %v56, %v130
    %v132 = vpop.f32.mrf.mxu0
    %v133 = vpop.f32.mrf.mxu0
    %v134 = vadd.f32 %v61, %v133
    %v135 = vpop.f32.mrf.mxu0
    %136 = vmatprep.mubr.bf16.mxu0 0
    %137 = vmatmul.mubr.bf16.gmra.mxu0 %v94
    %v138 = vpop.f32.mrf.mxu0
    %v139 = vadd.f32 %v66, %v138
    %v140 = vpop.f32.mrf.mxu0
    %v141 = vpop.f32.mrf.mxu0
    %v142 = vadd.f32 %v71, %v141
    %v143 = vpop.f32.mrf.mxu0
    %144 = vdwg.mxu0
    %v145 = vxor.u32 %v139, 2147483648
    %v146 = vxor.u32 %v142, 2147483648
    %v147 = vmul.f32 %v145, 1.442695
    %v148 = vpow.pop %v147
    %v149 = vmul.f32 %v146, 1.442695
    %v150 = vpow.pop %v149
    %v151 = vadd.f32 %v148, 1.0
    %v152 = vadd.f32 %v150, 1.0
    %v153 = vrcp.pop %v151
    %v154 = vmul.f32 1.0, %v153
    %v155 = vrcp.pop %v152
    %v156 = vmul.f32 1.0, %v155
    %v157 = vmul.f32 %v131, %v154
    %v158 = vmul.f32 %v134, %v156
    %v159 = vld [vmem:[%s5] sm:$0xf]
    %v160 = vld [vmem:[%s5 + $0x4] sm:$0xf]
    %v161 = vld [vmem:[%s5 + $0x8] sm:$0x3]
    %v162 = vpack.c.bf16 %v158, %v157
    %v163 = vld [vmem:[%s6] sm:$0xff]
    %v164 = vld [vmem:[%s6 + $0x8] sm:$0xff]
    %v165 = vld [vmem:[%s6 + $0x10] sm:$0xf]
    %167 = vset.pattern.permute.xlu0 0
    %168 = vperm.xlu0 %167, %v163
    %v169 = vpop.permute.xlu0 %168
    %172 = vset.pattern.permute.xlu0 0
    %173 = vperm.xlu0 %172, %v164
    %v174 = vpop.permute.xlu0 %173
    %177 = vset.pattern.permute.xlu0 0
    %178 = vperm.xlu0 %177, %v165
    %v179 = vpop.permute.xlu0 %178
    %v184 = vunpack.c.l.b16 %v159
    %v185 = vunpack.c.l.b16 %v160
    %v186 = vunpack.c.l.b16 %v161
    %v187 = vpack.c.b16 %v185, %v184
    %v188 = vpack.c.b16 %v186, %v186
    %v190 = vsel %vm89, %v187, 0
    %v193 = vsel %vm89, %v188, 0
    %195 = vmatprep.subr.bf16.mxu0 0
    %196 = vmatpush1.bf16.msra.mxu0 0
    %197 = vmatprep.subr.bf16.mxu0 0
    %198 = vmatpush1.bf16.msra.mxu0 0
    %199 = vmatprep.subr.bf16.mxu0 0
    %200 = vmatpush1.bf16.msra.mxu0 0
    %201 = vmatprep.subr.bf16.mxu0 0
    %202 = vmatpush1.bf16.msra.mxu0 0
    %203 = vmatprep.subr.bf16.mxu0 0
    %204 = vmatpush1.bf16.msra.mxu0 0
    %205 = vmatprep.subr.bf16.mxu0 0
    %206 = vmatpush1.bf16.msra.mxu0 0
    %207 = vmatprep.subr.bf16.mxu0 0
    %208 = vmatpush1.bf16.msra.mxu0 0
    %209 = vmatprep.subr.bf16.mxu0 0
    %210 = vmatpush1.bf16.msra.mxu0 %v162
    %211 = vmatprep.subr.bf16.mxu0 0
    %212 = vmatpush2.bf16.msra.mxu0 0
    %213 = vmatprep.subr.bf16.mxu0 0
    %214 = vmatpush2.bf16.msra.mxu0 0
    %215 = vmatprep.subr.bf16.mxu0 0
    %216 = vmatpush2.bf16.msra.mxu0 0
    %217 = vmatprep.subr.bf16.mxu0 0
    %218 = vmatpush2.bf16.msra.mxu0 0
    %219 = vmatprep.subr.bf16.mxu0 0
    %220 = vmatpush2.bf16.msra.mxu0 0
    %221 = vmatprep.subr.bf16.mxu0 0
    %222 = vmatpush2.bf16.msra.mxu0 0
    %223 = vmatprep.subr.bf16.mxu0 0
    %224 = vmatpush2.bf16.msra.mxu0 0
    %225 = vmatprep.subr.bf16.mxu0 0
    %226 = vmatpush2.bf16.msra.mxu0 0
    %227 = vmatprep.mubr.bf16.mxu0 0
    %228 = vmatmul.mubr.bf16.gmra.mxu0 %v190
    %v229 = vpop.f32.mrf.mxu0
    %v230 = vadd.f32 %v169, %v229
    %v231 = vpop.f32.mrf.mxu0
    %v232 = vpop.f32.mrf.mxu0
    %v233 = vadd.f32 %v174, %v232
    %v234 = vpop.f32.mrf.mxu0
    %235 = vmatprep.mubr.bf16.mxu0 0
    %236 = vmatmul.mubr.bf16.gmra.mxu0 %v193
    %v237 = vpop.f32.mrf.mxu0
    %v238 = vadd.f32 %v179, %v237
    %v239 = vpop.f32.mrf.mxu0
    %v240 = vpop.f32.mrf.mxu0
    %v241 = vpop.f32.mrf.mxu0
    %242 = vdwg.mxu0
    %v243 = vld [vmem:[%s1] sm:$0x1]
    %v244 = vlaneseq
    %v245 = vshrl.u32 %v244, 7
    %v246 = vsub.s32 0, %v245
    %v247 = vrot.slane %v243, %v246
    %v248 = vadd.f32 %v230, %v247
    %v249 = vmax.f32 %v233, %v248
    %v250 = vld [vmem:[%s1 + $0x1] sm:$0x1]
    %v251 = vlaneseq
    %v252 = vshrl.u32 %v251, 7
    %v253 = vsub.s32 0, %v252
    %v254 = vrot.slane %v250, %v253
    %v255 = vadd.f32 %v230, %v254
    %v257 = vrot.slane %v255, 4
    %v259 = vmax.f32 %v249, %v257
    %v260 = vld [vmem:[%s1 + $0x3] sm:$0x1]
    %v261 = vlaneseq
    %v262 = vshrl.u32 %v261, 7
    %v263 = vsub.s32 0, %v262
    %v264 = vrot.slane %v260, %v263
    %v265 = vadd.f32 %v233, %v264
    %v267 = vrot.slane %v265, 4
    %v269 = vmax.f32 %v259, %v267
    %v270 = vld [vmem:[%s1 + $0x4] sm:$0x1]
    %v271 = vlaneseq
    %v272 = vshrl.u32 %v271, 7
    %v273 = vsub.s32 0, %v272
    %v274 = vrot.slane %v270, %v273
    %v275 = vadd.f32 %v238, %v274
    %v276 = vmax.f32 %v269, %v275
    %v277 = vsub.f32 %v248, %v276
    %v278 = vmul.f32 %v277, 1.442695
    %v279 = vpow.pop %v278
    %v280 = vadd.f32 %v279, 0.0
    %283 = vrot.lane.b32.xlu0 %v157, 98
    %v284 = vpop.permute.xlu0 %283
    %285 = vrot.lane.b32.xlu0 %v158, 98
    %v286 = vpop.permute.xlu0 %285
    %289 = vrot.lane.b32.xlu0 %v157, 2
    %v290 = vpop.permute.xlu0 %289
    %291 = vrot.lane.b32.xlu0 %v158, 2
    %v292 = vpop.permute.xlu0 %291
    %vm295 = vcmask 15360
    %v296 = vsel %vm295, %v284, %v290
    %v297 = vsel %vm295, %v286, %v292
    %v299 = vrot.slane %v279, 4
    %vm301 = vcmask 1043456
    %v302 = vsel %vm301, %v279, %v299
    %v303 = vmul.f32 %v302, %v296
    %v304 = vmul.f32 %v302, %v297
    %v305 = vadd.f32 %v303, 0.0
    %v306 = vadd.f32 %v304, 0.0
    %v308 = vrot.slane %v276, 4
    %v310 = vsub.f32 %v255, %v308
    %v311 = vmul.f32 %v310, 1.442695
    %v312 = vpow.pop %v311
    %v314 = vrot.slane %v312, 4
    %v316 = vadd.f32 %v280, %v314
    %317 = vrot.lane.b32.xlu0 %v157, 97
    %v318 = vpop.permute.xlu0 %317
    %319 = vrot.lane.b32.xlu0 %v158, 97
    %v320 = vpop.permute.xlu0 %319
    %323 = vrot.lane.b32.xlu0 %v157, 1
    %v324 = vpop.permute.xlu0 %323
    %325 = vrot.lane.b32.xlu0 %v158, 1
    %v326 = vpop.permute.xlu0 %325
    %vm329 = vcmask 7168
    %v330 = vsel %vm329, %v318, %v324
    %v331 = vsel %vm329, %v320, %v326
    %v332 = vsel %vm301, %v314, %v312
    %v333 = vmul.f32 %v332, %v330
    %v334 = vmul.f32 %v332, %v331
    %v335 = vadd.f32 %v305, %v333
    %v336 = vadd.f32 %v306, %v334
    %v337 = vld [vmem:[%s1 + $0x2] sm:$0x1]
    %v338 = vlaneseq
    %v339 = vshrl.u32 %v338, 7
    %v340 = vsub.s32 0, %v339
    %v341 = vrot.slane %v337, %v340
    %v342 = vadd.f32 %v233, %v341
    %v343 = vsub.f32 %v342, %v276
    %v344 = vmul.f32 %v343, 1.442695
    %v345 = vpow.pop %v344
    %v346 = vadd.f32 %v316, %v345
    %v348 = vrot.slane %v345, 4
    %v350 = vsel %vm301, %v345, %v348
    %v351 = vmul.f32 %v350, %v157
    %v352 = vmul.f32 %v350, %v158
    %v353 = vadd.f32 %v335, %v351
    %v354 = vadd.f32 %v336, %v352
    %v355 = vsub.f32 %v265, %v308
    %v356 = vmul.f32 %v355, 1.442695
    %v357 = vpow.pop %v356
    %v359 = vrot.slane %v357, 4
    %v361 = vadd.f32 %v346, %v359
    %362 = vrot.lane.b32.xlu0 %v157, 127
    %v363 = vpop.permute.xlu0 %362
    %364 = vrot.lane.b32.xlu0 %v158, 127
    %v365 = vpop.permute.xlu0 %364
    %368 = vrot.lane.b32.xlu0 %v157, 31
    %v369 = vpop.permute.xlu0 %368
    %370 = vrot.lane.b32.xlu0 %v158, 31
    %v371 = vpop.permute.xlu0 %370
    %vm374 = vcmask 252928
    %v375 = vsel %vm374, %v363, %v369
    %v376 = vsel %vm374, %v365, %v371
    %v377 = vsel %vm301, %v359, %v357
    %v378 = vmul.f32 %v377, %v375
    %v379 = vmul.f32 %v377, %v376
    %v380 = vadd.f32 %v353, %v378
    %v381 = vadd.f32 %v354, %v379
    %v382 = vsub.f32 %v275, %v276
    %v383 = vmul.f32 %v382, 1.442695
    %v384 = vpow.pop %v383
    %v385 = vadd.f32 %v361, %v384
    %386 = vrot.lane.b32.xlu0 %v157, 126
    %v387 = vpop.permute.xlu0 %386
    %388 = vrot.lane.b32.xlu0 %v158, 126
    %v389 = vpop.permute.xlu0 %388
    %392 = vrot.lane.b32.xlu0 %v157, 30
    %v393 = vpop.permute.xlu0 %392
    %394 = vrot.lane.b32.xlu0 %v158, 30
    %v395 = vpop.permute.xlu0 %394
    %vm398 = vcmask 244736
    %v399 = vsel %vm398, %v387, %v393
    %v400 = vsel %vm398, %v389, %v395
    %v402 = vrot.slane %v384, 4
    %v404 = vsel %vm301, %v384, %v402
    %v405 = vmul.f32 %v404, %v399
    %v406 = vmul.f32 %v404, %v400
    %v407 = vadd.f32 %v380, %v405
    %v408 = vadd.f32 %v381, %v406
    %v409 = vrcp.pop %v385
    %v411 = vrot.slane %v409, 4
    %v413 = vsel %vm301, %v409, %v411
    %v414 = vmul.f32 %v407, %v413
    %v415 = vmul.f32 %v408, %v413
    %v416 = vld [vmem:[%s7] sm:$0xff]
    %v417 = vld [vmem:[%s7 + $0x8] sm:$0xff]
    %419 = vset.pattern.permute.xlu0 0
    %420 = vperm.xlu0 %419, %v416
    %v421 = vpop.permute.xlu0 %420
    %424 = vset.pattern.permute.xlu0 0
    %425 = vperm.xlu0 %424, %v417
    %v426 = vpop.permute.xlu0 %425
    %v428 = vadd.f32 %v414, %v421
    %v429 = vadd.f32 %v415, %v426
    %v430 = vld [vmem:[%s8] sm:$0xf]
    %v431 = vld [vmem:[%s8 + $0x4] sm:$0xf]
    %v432 = vpack.c.bf16 %v429, %v428
    %v433 = vld [vmem:[%s9] sm:$0xff]
    %v434 = vld [vmem:[%s9 + $0x8] sm:$0xff]
    %436 = vset.pattern.permute.xlu0 0
    %437 = vperm.xlu0 %436, %v433
    %v438 = vpop.permute.xlu0 %437
    %441 = vset.pattern.permute.xlu0 0
    %442 = vperm.xlu0 %441, %v434
    %v443 = vpop.permute.xlu0 %442
    %v447 = vunpack.c.l.b16 %v430
    %v448 = vunpack.c.l.b16 %v431
    %v449 = vpack.c.b16 %v448, %v447
    %v451 = vsel %vm89, %v449, 0
    %453 = vmatprep.subr.bf16.mxu0 0
    %454 = vmatpush1.bf16.msra.mxu0 0
    %455 = vmatprep.subr.bf16.mxu0 0
    %456 = vmatpush1.bf16.msra.mxu0 0
    %457 = vmatprep.subr.bf16.mxu0 0
    %458 = vmatpush1.bf16.msra.mxu0 0
    %459 = vmatprep.subr.bf16.mxu0 0
    %460 = vmatpush1.bf16.msra.mxu0 0
    %461 = vmatprep.subr.bf16.mxu0 0
    %462 = vmatpush1.bf16.msra.mxu0 0
    %463 = vmatprep.subr.bf16.mxu0 0
    %464 = vmatpush1.bf16.msra.mxu0 0
    %465 = vmatprep.subr.bf16.mxu0 0
    %466 = vmatpush1.bf16.msra.mxu0 0
    %467 = vmatprep.subr.bf16.mxu0 0
    %468 = vmatpush1.bf16.msra.mxu0 %v432
    %469 = vmatprep.subr.bf16.mxu0 0
    %470 = vmatpush2.bf16.msra.mxu0 0
    %471 = vmatprep.subr.bf16.mxu0 0
    %472 = vmatpush2.bf16.msra.mxu0 0
    %473 = vmatprep.subr.bf16.mxu0 0
    %474 = vmatpush2.bf16.msra.mxu0 0
    %475 = vmatprep.subr.bf16.mxu0 0
    %476 = vmatpush2.bf16.msra.mxu0 0
    %477 = vmatprep.subr.bf16.mxu0 0
    %478 = vmatpush2.bf16.msra.mxu0 0
    %479 = vmatprep.subr.bf16.mxu0 0
    %480 = vmatpush2.bf16.msra.mxu0 0
    %481 = vmatprep.subr.bf16.mxu0 0
    %482 = vmatpush2.bf16.msra.mxu0 0
    %483 = vmatprep.subr.bf16.mxu0 0
    %484 = vmatpush2.bf16.msra.mxu0 0
    %485 = vmatprep.mubr.bf16.mxu0 0
    %486 = vmatmul.mubr.bf16.gmra.mxu0 %v451
    %v487 = vpop.f32.mrf.mxu0
    %v488 = vadd.f32 %v438, %v487
    %v489 = vpop.f32.mrf.mxu0
    %v490 = vpop.f32.mrf.mxu0
    %v491 = vadd.f32 %v443, %v490
    %v492 = vpop.f32.mrf.mxu0
    %493 = vdwg.mxu0
    %vm494 = vcmask 261120
    %v495 = vsel %vm494, %v488, 0.0
    %v496 = vsel %vm494, %v491, 0.0
    %v497 = vadd.f32 %v495, %v496
    %v498 = vrot.slane %v497, 4
    %v499 = vadd.f32 %v497, %v498
    %v500 = vrot.slane %v499, 2
    %v501 = vadd.f32 %v499, %v500
    %v502 = vrot.slane %v501, 1
    %v503 = vadd.f32 %v501, %v502
    %v504 = vmul.f32 %v488, %v488
    %v505 = vmul.f32 %v491, %v491
    %v506 = vsel %vm494, %v504, 0.0
    %v507 = vsel %vm494, %v505, 0.0
    %v508 = vadd.f32 %v506, %v507
    %v509 = vrot.slane %v508, 4
    %v510 = vadd.f32 %v508, %v509
    %v511 = vrot.slane %v510, 2
    %v512 = vadd.f32 %v510, %v511
    %v513 = vrot.slane %v512, 1
    %v514 = vadd.f32 %v512, %v513
    %v515 = vld [vmem:[%s2] sm:$0x1]
    %v516 = vmul.f32 %v515, %v503
    %vm517 = vcmask 253952
    %v518 = vsel %vm517, %v516, 0.0
    %519 = vadd.xlane.f32.xlu0 %v518
    %v520 = vpop.xlane.xlu0 %519
    %v521 = vrot.slane %v520, 4
    %v522 = vadd.f32 %v520, %v521
    %v523 = vrot.slane %v522, 2
    %v524 = vadd.f32 %v522, %v523
    %v525 = vrot.slane %v524, 1
    %v526 = vadd.f32 %v524, %v525
    %s527 = vtos %v526
    %v528 = vstv %s527
    %v529 = vmul.f32 %v528, 0.00390625
    %v530 = vmul.f32 %v515, %v514
    %v531 = vsel %vm517, %v530, 0.0
    %532 = vadd.xlane.f32.xlu0 %v531
    %v533 = vpop.xlane.xlu0 %532
    %v534 = vrot.slane %v533, 4
    %v535 = vadd.f32 %v533, %v534
    %v536 = vrot.slane %v535, 2
    %v537 = vadd.f32 %v535, %v536
    %v538 = vrot.slane %v537, 1
    %v539 = vadd.f32 %v537, %v538
    %s540 = vtos %v539
    %v541 = vstv %s540
    %v542 = vmul.f32 %v541, 0.00390625
    %v543 = vmul.f32 %v529, %v529
    %v544 = vsub.f32 %v542, %v543
    %v545 = vmax.f32 %v544, 0.0
    %v546 = vadd.f32 %v545, 1e-05
    %v547 = vrsqrt.pop %v546
    %v548 = vmul.f32 %v515, %v529
    %v549 = vadd.f32 %v548, 0.0
    %v550 = vmul.f32 %v515, %v547
    %v551 = vadd.f32 %v550, 0.0
    %v552 = vld [vmem:[%s2 + $0x1] sm:$0x1]
    %v553 = vmul.f32 %v552, %v503
    %v554 = vsel %vm517, %v553, 0.0
    %555 = vadd.xlane.f32.xlu0 %v554
    %v556 = vpop.xlane.xlu0 %555
    %v557 = vrot.slane %v556, 4
    %v558 = vadd.f32 %v556, %v557
    %v559 = vrot.slane %v558, 2
    %v560 = vadd.f32 %v558, %v559
    %v561 = vrot.slane %v560, 1
    %v562 = vadd.f32 %v560, %v561
    %s563 = vtos %v562
    %v564 = vstv %s563
    %v565 = vmul.f32 %v564, 0.00390625
    %v566 = vmul.f32 %v552, %v514
    %v567 = vsel %vm517, %v566, 0.0
    %568 = vadd.xlane.f32.xlu0 %v567
    %v569 = vpop.xlane.xlu0 %568
    %v570 = vrot.slane %v569, 4
    %v571 = vadd.f32 %v569, %v570
    %v572 = vrot.slane %v571, 2
    %v573 = vadd.f32 %v571, %v572
    %v574 = vrot.slane %v573, 1
    %v575 = vadd.f32 %v573, %v574
    %s576 = vtos %v575
    %v577 = vstv %s576
    %v578 = vmul.f32 %v577, 0.00390625
    %v579 = vmul.f32 %v565, %v565
    %v580 = vsub.f32 %v578, %v579
    %v581 = vmax.f32 %v580, 0.0
    %v582 = vadd.f32 %v581, 1e-05
    %v583 = vrsqrt.pop %v582
    %v584 = vmul.f32 %v552, %v565
    %v585 = vadd.f32 %v549, %v584
    %v586 = vmul.f32 %v552, %v583
    %v587 = vadd.f32 %v551, %v586
    %v588 = vlaneseq
    %v589 = vshrl.u32 %v588, 7
    %v590 = vsub.s32 0, %v589
    %v591 = vrot.slane %v585, %v590
    %v592 = vsub.f32 %v488, %v591
    %v593 = vsub.f32 %v491, %v591
    %v594 = vlaneseq
    %v595 = vshrl.u32 %v594, 7
    %v596 = vsub.s32 0, %v595
    %v597 = vrot.slane %v587, %v596
    %v598 = vmul.f32 %v592, %v597
    %v599 = vmul.f32 %v593, %v597
    %v600 = vld [vmem:[%s10] sm:$0xff]
    %v601 = vld [vmem:[%s10 + $0x8] sm:$0xff]
    %603 = vset.pattern.permute.xlu0 0
    %604 = vperm.xlu0 %603, %v600
    %v605 = vpop.permute.xlu0 %604
    %608 = vset.pattern.permute.xlu0 0
    %609 = vperm.xlu0 %608, %v601
    %v610 = vpop.permute.xlu0 %609
    %v612 = vmul.f32 %v598, %v605
    %v613 = vmul.f32 %v599, %v610
    %v614 = vld [vmem:[%s11] sm:$0xff]
    %v615 = vld [vmem:[%s11 + $0x8] sm:$0xff]
    %617 = vset.pattern.permute.xlu0 0
    %618 = vperm.xlu0 %617, %v614
    %v619 = vpop.permute.xlu0 %618
    %622 = vset.pattern.permute.xlu0 0
    %623 = vperm.xlu0 %622, %v615
    %v624 = vpop.permute.xlu0 %623
    %v626 = vadd.f32 %v612, %v619
    %v627 = vadd.f32 %v613, %v624
    %628 = vst.msk [vmem:[#allocation2] sm:$0xff] %vm494, %v626
    %629 = vst.msk [vmem:[#allocation2 + $0x8] sm:$0xff] %vm494, %v627
    // Predicated region
    $region50: #{tpu_custom_call.1} parent=1 // pred_check
      _
    $region51: #{tpu_custom_call.1} parent=1 // pred_check_branch
      %631 = sbr.rel (0) target = $region53
    $region52: #{tpu_custom_call.1} parent=1 // pred_region
      %s633 = ssub.s32 256, 256
      %634 = vsyncadd [#allocation3], %s633
      %s635 = sshll.u32 [#allocation2], 4
      %s636 = int_to_ptr.vmem [resolvable:$true] %s635
      %641 = dma.vmem_to_hbm [thread:$0]  %s636, 256, %s12, [#allocation3], 128, 128, 8
    $region53: #{tpu_custom_call.1} parent=1 // pred_fallthru
      _
    // Predicated region
    $region54: #{tpu_custom_call.1} parent=1 // pred_check
      _
    $region55: #{tpu_custom_call.1} parent=1 // pred_check_branch
      %643 = sbr.rel (0) target = $region57
    $region56: #{tpu_custom_call.1} parent=1 // pred_region
      %644 = dma.done [#allocation3], 256
    $region57: #{tpu_custom_call.1} parent=1 // pred_fallthru
      _
    %645 = vsyncpa [#allocation3], 1

</llo_original>
